<compile_context>
chip_gen: v7x
topology: tpu7x:2x2x1
jax: 0.10.0
libtpu: 0.0.40
codegen_flags: <defaults>
</compile_context>

<pallas_src>
import jax
import jax.numpy as jnp
from jax.experimental import pallas as pl
from jax.experimental.pallas import tpu as pltpu


def _round_up(n, m):
    return (n + m - 1) // m * m


def autoencoder_kernel(x_ref,
                       w1_ref, b1_ref,
                       w2_ref, b2_ref,
                       w3_ref, b3_ref,
                       w4_ref, b4_ref,
                       o_ref):
    # bf16 operands on the MXU, f32 accumulation.
    x = x_ref[...].astype(jnp.bfloat16)

    # ---- Encoder ----
    h1 = jnp.dot(x, w1_ref[...], preferred_element_type=jnp.float32) + b1_ref[...]
    h1 = jnp.maximum(h1, 0.0).astype(jnp.bfloat16)                       # ReLU
    z = jnp.dot(h1, w2_ref[...], preferred_element_type=jnp.float32) + b2_ref[...]
    z = jnp.maximum(z, 0.0).astype(jnp.bfloat16)                         # ReLU

    # ---- Decoder ----
    h2 = jnp.dot(z, w3_ref[...], preferred_element_type=jnp.float32) + b3_ref[...]
    h2 = jnp.maximum(h2, 0.0).astype(jnp.bfloat16)                       # ReLU
    y = jnp.dot(h2, w4_ref[...], preferred_element_type=jnp.float32) + b4_ref[...]

    # Sigmoid as exp (EUP) + approximate reciprocal (EUP): keeps the epilogue
    # off the VALU path. 1/(1+exp(-y)) is stable for all y (exp->inf -> 0).
    e = jnp.exp(-y)
    y = pl.reciprocal(1.0 + e, approx=True)

    o_ref[...] = y.astype(o_ref.dtype)


def autoencoder_forward(x, params, *, tile_b=256):
    """x: (B, input_size) f32. params: transposed weights (in, out), biases (1, out)."""
    B, input_size = x.shape
    f32, bf16 = jnp.float32, jnp.bfloat16
    n_hidden = 256

    # ---- Weights: bf16 operands; lane-pad the encoding dim to a multiple of 128 ----
    w1 = params["w1"].astype(bf16)                    # (input_size, 256)
    b1 = params["b1"].astype(f32)                     # (1, 256)
    w2, b2 = params["w2"], params["b2"]               # (256, enc), (1, enc)
    w3 = params["w3"]                                 # (enc, 256)
    b3 = params["b3"].astype(f32)                     # (1, 256)
    w4 = params["w4"].astype(bf16)                    # (256, input_size)
    b4 = params["b4"].astype(f32)                     # (1, input_size)

    enc = w2.shape[1]
    enc_pad = _round_up(enc, 128)
    if enc_pad != enc:
        # Zero-padding is numerically identical: padded z columns stay 0 after
        # ReLU(0 + 0) and the padded (zero) rows of w3 contribute nothing.
        w2 = jnp.pad(w2, ((0, 0), (0, enc_pad - enc)))
        b2 = jnp.pad(b2, ((0, 0), (0, enc_pad - enc)))
        w3 = jnp.pad(w3, ((0, enc_pad - enc), (0, 0)))
    w2 = w2.astype(bf16)
    b2 = b2.astype(f32)
    w3 = w3.astype(bf16)

    # ---- Batch tiling: big MXU-friendly tiles; pad ragged batches with zeros ----
    tb = min(tile_b, _round_up(B, 8))
    if _round_up(B, tb) // tb < 2 and tb >= 256:
        tb //= 2                      # give both v7x TensorCores a tile when possible
    B_pad = _round_up(B, tb)
    xp = x if B_pad == B else jnp.pad(x, ((0, B_pad - B), (0, 0)))
    grid = (B_pad // tb,)

    # ---- Cost estimate so XLA schedules/overlaps this call correctly ----
    flops = 2 * B_pad * (input_size * n_hidden + n_hidden * enc_pad
                         + enc_pad * n_hidden + n_hidden * input_size)
    bytes_accessed = (xp.size * 4 + B_pad * input_size * 4
                      + sum(int(a.size) * a.dtype.itemsize
                            for a in (w1, b1, w2, b2, w3, b3, w4, b4)))
    cost = pl.CostEstimate(flops=flops,
                           transcendentals=B_pad * input_size,
                           bytes_accessed=bytes_accessed)

    def full_spec(arr):
        # Whole-array block, same block for every grid step (weights stay resident).
        return pl.BlockSpec(arr.shape, lambda i: (0, 0))

    out = pl.pallas_call(
        autoencoder_kernel,
        out_shape=jax.ShapeDtypeStruct((B_pad, input_size), x.dtype),
        grid_spec=pltpu.PrefetchScalarGridSpec(
            num_scalar_prefetch=0,
            grid=grid,
            in_specs=[
                pl.BlockSpec((tb, input_size), lambda i: (i, 0)),     # x tile
                full_spec(w1), full_spec(b1),
                full_spec(w2), full_spec(b2),
                full_spec(w3), full_spec(b3),
                full_spec(w4), full_spec(b4),
            ],
            out_specs=pl.BlockSpec((tb, input_size), lambda i: (i, 0)),
        ),
        compiler_params=pltpu.CompilerParams(
            dimension_semantics=("parallel",),
            vmem_limit_bytes=64 * 1024 * 1024,   # sized for v7x (64 MiB physical)
        ),
        cost_estimate=cost,
    )(xp, w1, b1, w2, b2, w3, b3, w4, b4)

    return out[:B] if B_pad != B else out


def init_params(key, input_size, encoding_dim):
    """Deterministic init mimicking nn.Linear's U(-1/sqrt(fan_in), 1/sqrt(fan_in)).
    Weights are stored transposed: (in_features, out_features)."""
    dims = [(input_size, 256), (256, encoding_dim), (encoding_dim, 256), (256, input_size)]
    params = {}
    for idx, (fan_in, fan_out) in enumerate(dims, start=1):
        key, kw, kb = jax.random.split(key, 3)
        bound = 1.0 / (fan_in ** 0.5)
        params[f"w{idx}"] = jax.random.uniform(
            kw, (fan_in, fan_out), jnp.float32, minval=-bound, maxval=bound)
        params[f"b{idx}"] = jax.random.uniform(
            kb, (1, fan_out), jnp.float32, minval=-bound, maxval=bound)
    return params


def reference_forward(x, p):
    """Pure-f32 reference with PyTorch semantics."""
    h = jnp.maximum(x @ p["w1"] + p["b1"], 0.0)
    z = jnp.maximum(h @ p["w2"] + p["b2"], 0.0)
    h = jnp.maximum(z @ p["w3"] + p["b3"], 0.0)
    return jax.nn.sigmoid(h @ p["w4"] + p["b4"])


if __name__ == "__main__":
    batch = 8
    input_size = 128
    encoding_dim = 32

    key = jax.random.PRNGKey(0)
    key, kx, kx2 = jax.random.split(key, 3)
    x = jax.random.normal(kx, (batch, input_size), jnp.float32)
    params = init_params(key, input_size, encoding_dim)

    out = jax.block_until_ready(autoencoder_forward(x, params))
    ref = reference_forward(x, params)
    assert out.shape == (batch, input_size)
    # bf16 matmul operands + approximate EUP reciprocal vs full-f32 reference.
    assert jnp.allclose(out, ref, atol=2e-2, rtol=2e-2), "mismatch vs reference"

    # Also exercise the ragged-batch (pad + slice-back) path.
    x2 = jax.random.normal(kx2, (30, input_size), jnp.float32)
    out2 = jax.block_until_ready(autoencoder_forward(x2, params))
    ref2 = reference_forward(x2, params)
    assert out2.shape == (30, input_size)
    assert jnp.allclose(out2, ref2, atol=2e-2, rtol=2e-2), "mismatch vs reference (ragged)"

    print("KERNEL_OK")
</pallas_src>

<mosaic_0001>
module attributes {stable_mosaic.version = 11 : i64} {
  func.func @autoencoder_kernel(%arg0: i32, %arg1: memref<8x128xf32, #tpu.memory_space<vmem>>, %arg2: memref<128x256xbf16, #tpu.memory_space<vmem>>, %arg3: memref<1x256xf32, #tpu.memory_space<vmem>>, %arg4: memref<256x128xbf16, #tpu.memory_space<vmem>>, %arg5: memref<1x128xf32, #tpu.memory_space<vmem>>, %arg6: memref<128x256xbf16, #tpu.memory_space<vmem>>, %arg7: memref<1x256xf32, #tpu.memory_space<vmem>>, %arg8: memref<256x128xbf16, #tpu.memory_space<vmem>>, %arg9: memref<1x128xf32, #tpu.memory_space<vmem>>, %arg10: memref<8x128xf32, #tpu.memory_space<vmem>>) attributes {dimension_semantics = [#tpu.dimension_semantics<parallel>], iteration_bounds = array<i64: 1>, scalar_prefetch = 0 : i64, scratch_operands = 0 : i64, tpu.core_type = #tpu.core_type<tc>, window_params = [{transform_indices = @transform_0, window_bounds = array<i64: 8, 128>}, {pipeline_mode = #tpu.pipeline_mode<synchronous>, transform_indices = @transform_1, window_bounds = array<i64: 128, 256>}, {pipeline_mode = #tpu.pipeline_mode<synchronous>, transform_indices = @transform_2, window_bounds = array<i64: 1, 256>}, {pipeline_mode = #tpu.pipeline_mode<synchronous>, transform_indices = @transform_3, window_bounds = array<i64: 256, 128>}, {pipeline_mode = #tpu.pipeline_mode<synchronous>, transform_indices = @transform_4, window_bounds = array<i64: 1, 128>}, {pipeline_mode = #tpu.pipeline_mode<synchronous>, transform_indices = @transform_5, window_bounds = array<i64: 128, 256>}, {pipeline_mode = #tpu.pipeline_mode<synchronous>, transform_indices = @transform_6, window_bounds = array<i64: 1, 256>}, {pipeline_mode = #tpu.pipeline_mode<synchronous>, transform_indices = @transform_7, window_bounds = array<i64: 256, 128>}, {pipeline_mode = #tpu.pipeline_mode<synchronous>, transform_indices = @transform_8, window_bounds = array<i64: 1, 128>}, {transform_indices = @transform_9, window_bounds = array<i64: 8, 128>}]} {
    %c0 = arith.constant 0 : index
    %c0_0 = arith.constant 0 : index
    %0 = vector.load %arg1[%c0, %c0_0] : memref<8x128xf32, #tpu.memory_space<vmem>>, vector<8x128xf32>
    %1 = arith.truncf %0 : vector<8x128xf32> to vector<8x128xbf16>
    %c0_1 = arith.constant 0 : index
    %c0_2 = arith.constant 0 : index
    %2 = vector.load %arg2[%c0_1, %c0_2] : memref<128x256xbf16, #tpu.memory_space<vmem>>, vector<128x256xbf16>
    %cst = arith.constant dense<0.000000e+00> : vector<8x256xf32>
    %3 = tpu.matmul %1, %2, %cst {dimension_numbers = #tpu.dot_dimension_numbers<[1], [0], [0], [1], [0, 0, 1, 1], [], []>} : vector<8x128xbf16>, vector<128x256xbf16>, vector<8x256xf32> -> vector<8x256xf32>
    %c0_3 = arith.constant 0 : index
    %c0_4 = arith.constant 0 : index
    %4 = vector.load %arg3[%c0_3, %c0_4] : memref<1x256xf32, #tpu.memory_space<vmem>>, vector<1x256xf32>
    %5 = vector.broadcast %4 : vector<1x256xf32> to vector<8x256xf32>
    %6 = arith.addf %3, %5 : vector<8x256xf32>
    %cst_5 = arith.constant 0.000000e+00 : f32
    %7 = vector.broadcast %cst_5 : f32 to vector<8x256xf32>
    %8 = arith.maximumf %6, %7 : vector<8x256xf32>
    %9 = arith.truncf %8 : vector<8x256xf32> to vector<8x256xbf16>
    %c0_6 = arith.constant 0 : index
    %c0_7 = arith.constant 0 : index
    %10 = vector.load %arg4[%c0_6, %c0_7] : memref<256x128xbf16, #tpu.memory_space<vmem>>, vector<256x128xbf16>
    %cst_8 = arith.constant dense<0.000000e+00> : vector<8x128xf32>
    %11 = tpu.matmul %9, %10, %cst_8 {dimension_numbers = #tpu.dot_dimension_numbers<[1], [0], [0], [1], [0, 0, 1, 1], [], []>} : vector<8x256xbf16>, vector<256x128xbf16>, vector<8x128xf32> -> vector<8x128xf32>
    %c0_9 = arith.constant 0 : index
    %c0_10 = arith.constant 0 : index
    %12 = vector.load %arg5[%c0_9, %c0_10] : memref<1x128xf32, #tpu.memory_space<vmem>>, vector<1x128xf32>
    %13 = vector.broadcast %12 : vector<1x128xf32> to vector<8x128xf32>
    %14 = arith.addf %11, %13 : vector<8x128xf32>
    %cst_11 = arith.constant 0.000000e+00 : f32
    %15 = vector.broadcast %cst_11 : f32 to vector<8x128xf32>
    %16 = arith.maximumf %14, %15 : vector<8x128xf32>
    %17 = arith.truncf %16 : vector<8x128xf32> to vector<8x128xbf16>
    %c0_12 = arith.constant 0 : index
    %c0_13 = arith.constant 0 : index
    %18 = vector.load %arg6[%c0_12, %c0_13] : memref<128x256xbf16, #tpu.memory_space<vmem>>, vector<128x256xbf16>
    %cst_14 = arith.constant dense<0.000000e+00> : vector<8x256xf32>
    %19 = tpu.matmul %17, %18, %cst_14 {dimension_numbers = #tpu.dot_dimension_numbers<[1], [0], [0], [1], [0, 0, 1, 1], [], []>} : vector<8x128xbf16>, vector<128x256xbf16>, vector<8x256xf32> -> vector<8x256xf32>
    %c0_15 = arith.constant 0 : index
    %c0_16 = arith.constant 0 : index
    %20 = vector.load %arg7[%c0_15, %c0_16] : memref<1x256xf32, #tpu.memory_space<vmem>>, vector<1x256xf32>
    %21 = vector.broadcast %20 : vector<1x256xf32> to vector<8x256xf32>
    %22 = arith.addf %19, %21 : vector<8x256xf32>
    %cst_17 = arith.constant 0.000000e+00 : f32
    %23 = vector.broadcast %cst_17 : f32 to vector<8x256xf32>
    %24 = arith.maximumf %22, %23 : vector<8x256xf32>
    %25 = arith.truncf %24 : vector<8x256xf32> to vector<8x256xbf16>
    %c0_18 = arith.constant 0 : index
    %c0_19 = arith.constant 0 : index
    %26 = vector.load %arg8[%c0_18, %c0_19] : memref<256x128xbf16, #tpu.memory_space<vmem>>, vector<256x128xbf16>
    %cst_20 = arith.constant dense<0.000000e+00> : vector<8x128xf32>
    %27 = tpu.matmul %25, %26, %cst_20 {dimension_numbers = #tpu.dot_dimension_numbers<[1], [0], [0], [1], [0, 0, 1, 1], [], []>} : vector<8x256xbf16>, vector<256x128xbf16>, vector<8x128xf32> -> vector<8x128xf32>
    %c0_21 = arith.constant 0 : index
    %c0_22 = arith.constant 0 : index
    %28 = vector.load %arg9[%c0_21, %c0_22] : memref<1x128xf32, #tpu.memory_space<vmem>>, vector<1x128xf32>
    %29 = vector.broadcast %28 : vector<1x128xf32> to vector<8x128xf32>
    %30 = arith.addf %27, %29 : vector<8x128xf32>
    %cst_23 = arith.constant 0.000000e+00 : f32
    %31 = vector.broadcast %cst_23 : f32 to vector<8x128xf32>
    %32 = arith.subf %31, %30 : vector<8x128xf32>
    %33 = math.exp %32 : vector<8x128xf32>
    %cst_24 = arith.constant 1.000000e+00 : f32
    %34 = vector.broadcast %cst_24 : f32 to vector<8x128xf32>
    %35 = arith.addf %34, %33 : vector<8x128xf32>
    %36 = tpu.reciprocal %35 {approx = true} : vector<8x128xf32> -> vector<8x128xf32>
    %c0_25 = arith.constant 0 : index
    %c0_26 = arith.constant 0 : index
    %37 = vector.load %arg10[%c0_25, %c0_26] : memref<8x128xf32, #tpu.memory_space<vmem>>, vector<8x128xf32>
    tpu.vector_store %arg10[%c0_25, %c0_26], %36 {strides = array<i32>} : memref<8x128xf32, #tpu.memory_space<vmem>>, vector<8x128xf32>,
    return
  }
  func.func @transform_0(%arg0: i32) -> (i32, i32) {
    %c0_i32 = arith.constant 0 : i32
    %c0_i32_0 = arith.constant 0 : i32
    return %arg0, %c0_i32 : i32, i32
  }
  func.func @transform_1(%arg0: i32) -> (i32, i32) {
    %c0_i32 = arith.constant 0 : i32
    %c0_i32_0 = arith.constant 0 : i32
    %c0_i32_1 = arith.constant 0 : i32
    return %c0_i32, %c0_i32_0 : i32, i32
  }
  func.func @transform_2(%arg0: i32) -> (i32, i32) {
    %c0_i32 = arith.constant 0 : i32
    %c0_i32_0 = arith.constant 0 : i32
    %c0_i32_1 = arith.constant 0 : i32
    return %c0_i32, %c0_i32_0 : i32, i32
  }
  func.func @transform_3(%arg0: i32) -> (i32, i32) {
    %c0_i32 = arith.constant 0 : i32
    %c0_i32_0 = arith.constant 0 : i32
    %c0_i32_1 = arith.constant 0 : i32
    return %c0_i32, %c0_i32_0 : i32, i32
  }
  func.func @transform_4(%arg0: i32) -> (i32, i32) {
    %c0_i32 = arith.constant 0 : i32
    %c0_i32_0 = arith.constant 0 : i32
    %c0_i32_1 = arith.constant 0 : i32
    return %c0_i32, %c0_i32_0 : i32, i32
  }
  func.func @transform_5(%arg0: i32) -> (i32, i32) {
    %c0_i32 = arith.constant 0 : i32
    %c0_i32_0 = arith.constant 0 : i32
    %c0_i32_1 = arith.constant 0 : i32
    return %c0_i32, %c0_i32_0 : i32, i32
  }
  func.func @transform_6(%arg0: i32) -> (i32, i32) {
    %c0_i32 = arith.constant 0 : i32
    %c0_i32_0 = arith.constant 0 : i32
    %c0_i32_1 = arith.constant 0 : i32
    return %c0_i32, %c0_i32_0 : i32, i32
  }
  func.func @transform_7(%arg0: i32) -> (i32, i32) {
    %c0_i32 = arith.constant 0 : i32
    %c0_i32_0 = arith.constant 0 : i32
    %c0_i32_1 = arith.constant 0 : i32
    return %c0_i32, %c0_i32_0 : i32, i32
  }
  func.func @transform_8(%arg0: i32) -> (i32, i32) {
    %c0_i32 = arith.constant 0 : i32
    %c0_i32_0 = arith.constant 0 : i32
    %c0_i32_1 = arith.constant 0 : i32
    return %c0_i32, %c0_i32_0 : i32, i32
  }
  func.func @transform_9(%arg0: i32) -> (i32, i32) {
    %c0_i32 = arith.constant 0 : i32
    %c0_i32_0 = arith.constant 0 : i32
    return %arg0, %c0_i32 : i32, i32
  }
}

</mosaic_0001>

<llo_original>
// kernel: tpu_custom_call.1
$region0: #{tpu_custom_call.1}
  #allocation0 [shape = 'u32[]', space=smem, size = 0x4, offset = 0x4, fixed_abs, tag = 'smem constant byte address 0x4 - core index']
  #allocation1 [shape = 'u32[144,128]{1,0:T(1,128)}', space=vmem, size = 0x12000, scoped, tag = 'internal scratch']
  %s0 = inlined_call_operand.hbm [shape: f32[8,128], index: 0, kind: input, shape index: {}]
  %s1 = inlined_call_operand.hbm [shape: bf16[128,256], index: 1, kind: input, shape index: {}]
  %s2 = inlined_call_operand.hbm [shape: f32[1,256], index: 2, kind: input, shape index: {}]
  %s3 = inlined_call_operand.hbm [shape: bf16[256,128], index: 3, kind: input, shape index: {}]
  %s4 = inlined_call_operand.hbm [shape: f32[1,128], index: 4, kind: input, shape index: {}]
  %s5 = inlined_call_operand.hbm [shape: bf16[128,256], index: 5, kind: input, shape index: {}]
  %s6 = inlined_call_operand.hbm [shape: f32[1,256], index: 6, kind: input, shape index: {}]
  %s7 = inlined_call_operand.hbm [shape: bf16[256,128], index: 7, kind: input, shape index: {}]
  %s8 = inlined_call_operand.hbm [shape: f32[1,128], index: 8, kind: input, shape index: {}]
  %s9 = inlined_call_operand.hbm [shape: f32[8,128], index: 9, kind: output, shape index: {}]
  %s10 = sld [smem:[#allocation0]]
  $region82: #{tpu_custom_call.1} parent=0
    _
  %s12 = ssub.s32 1, %s10
  %s13 = scalar_select 0, %s12, %s10
  $region1: #{tpu_custom_call.1} parent=0
    #allocation2 [shape = 'u8[4096]{0}', space=vmem, size = 0x1000, scoped, tag = 'input window, operand 0, single buffered']
    #allocation3 [shape = 's32[1]{0}', space=sflag, size = 0x4, scoped, tag = 'scoped memory for tpu_custom_call.1']
    #allocation4 [shape = 's32[1]{0}', space=sflag, size = 0x4, scoped, tag = 'scoped memory for tpu_custom_call.1']
    #allocation5 [shape = 'u8[65536]{0}', space=vmem, size = 0x10000, scoped, tag = 'input window, operand 1, single buffered']
    #allocation6 [shape = 's32[1]{0}', space=sflag, size = 0x4, scoped, tag = 'scoped memory for tpu_custom_call.1']
    #allocation7 [shape = 'u8[1024]{0}', space=vmem, size = 0x400, scoped, tag = 'input window, operand 2, single buffered']
    #allocation8 [shape = 'u8[65536]{0}', space=vmem, size = 0x10000, scoped, tag = 'input window, operand 3, single buffered']
    #allocation9 [shape = 's32[1]{0}', space=sflag, size = 0x4, scoped, tag = 'scoped memory for tpu_custom_call.1']
    #allocation10 [shape = 'u8[512]{0}', space=vmem, size = 0x400, scoped, tag = 'input window, operand 4, single buffered']
    #allocation11 [shape = 'u8[65536]{0}', space=vmem, size = 0x10000, scoped, tag = 'input window, operand 5, single buffered']
    #allocation12 [shape = 's32[1]{0}', space=sflag, size = 0x4, scoped, tag = 'scoped memory for tpu_custom_call.1']
    #allocation13 [shape = 'u8[1024]{0}', space=vmem, size = 0x400, scoped, tag = 'input window, operand 6, single buffered']
    #allocation14 [shape = 'u8[65536]{0}', space=vmem, size = 0x10000, scoped, tag = 'input window, operand 7, single buffered']
    #allocation15 [shape = 's32[1]{0}', space=sflag, size = 0x4, scoped, tag = 'scoped memory for tpu_custom_call.1']
    #allocation16 [shape = 'u8[512]{0}', space=vmem, size = 0x400, scoped, tag = 'input window, operand 8, single buffered']
    #allocation17 [shape = 'u8[4096]{0}', space=vmem, size = 0x1000, scoped, tag = 'output window, operand 0, single buffered']
    %14 = vsyncpa [#allocation3], 0
    %15 = vsyncpa [#allocation6], 0
    %16 = vsyncpa [#allocation9], 0
    %17 = vsyncpa [#allocation12], 0
    %18 = vsyncpa [#allocation15], 0
    %19 = vsyncpa [#allocation4], 0
    // Predicated region
    $region2: #{tpu_custom_call.1} parent=1 // pred_check
      _
    $region3: #{tpu_custom_call.1} parent=1 // pred_check_branch
      %21 = sbr.rel (0) target = $region5
    $region4: #{tpu_custom_call.1} parent=1 // pred_region
      %s23 = ssub.s32 128, 128
      %24 = vsyncadd [#allocation3], %s23
      %s26 = sshll.u32 [#allocation2], 4
      %s27 = int_to_ptr.vmem [resolvable:$true] %s26
      %29 = dma.hbm_to_vmem [thread:$0]  %s0, 128, %s27, [#allocation3]
    $region5: #{tpu_custom_call.1} parent=1 // pred_fallthru
      _
    // Predicated region
    $region6: #{tpu_custom_call.1} parent=1 // pred_check
      _
    $region7: #{tpu_custom_call.1} parent=1 // pred_check_branch
      %31 = sbr.rel (0) target = $region9
    $region8: #{tpu_custom_call.1} parent=1 // pred_region
      %s33 = ssub.s32 2048, 2048
      %34 = vsyncadd [#allocation6], %s33
      %s35 = sshll.u32 [#allocation5], 4
      %s36 = int_to_ptr.vmem [resolvable:$true] %s35
      %41 = dma.hbm_to_vmem [thread:$0]  %s1, 2048, %s36, [#allocation6], 128, 128, 8
    $region9: #{tpu_custom_call.1} parent=1 // pred_fallthru
      _
    // Predicated region
    $region10: #{tpu_custom_call.1} parent=1 // pred_check
      _
    $region11: #{tpu_custom_call.1} parent=1 // pred_check_branch
      %43 = sbr.rel (0) target = $region13
    $region12: #{tpu_custom_call.1} parent=1 // pred_region
      %s45 = ssub.s32 32, 32
      %46 = vsyncadd [#allocation6], %s45
      %s48 = sshll.u32 [#allocation7], 4
      %s49 = int_to_ptr.vmem [resolvable:$true] %s48
      %51 = dma.hbm_to_vmem [thread:$0]  %s2, 32, %s49, [#allocation6]
    $region13: #{tpu_custom_call.1} parent=1 // pred_fallthru
      _
    // Predicated region
    $region14: #{tpu_custom_call.1} parent=1 // pred_check
      _
    $region15: #{tpu_custom_call.1} parent=1 // pred_check_branch
      %53 = sbr.rel (0) target = $region17
    $region16: #{tpu_custom_call.1} parent=1 // pred_region
      %s55 = ssub.s32 2048, 2048
      %56 = vsyncadd [#allocation9], %s55
      %s57 = sshll.u32 [#allocation8], 4
      %s58 = int_to_ptr.vmem [resolvable:$true] %s57
      %63 = dma.hbm_to_vmem [thread:$0]  %s3, 2048, %s58, [#allocation9], 64, 64, 4
    $region17: #{tpu_custom_call.1} parent=1 // pred_fallthru
      _
    // Predicated region
    $region18: #{tpu_custom_call.1} parent=1 // pred_check
      _
    $region19: #{tpu_custom_call.1} parent=1 // pred_check_branch
      %65 = sbr.rel (0) target = $region21
    $region20: #{tpu_custom_call.1} parent=1 // pred_region
      %s67 = ssub.s32 16, 16
      %68 = vsyncadd [#allocation9], %s67
      %s70 = sshll.u32 [#allocation10], 4
      %s71 = int_to_ptr.vmem [resolvable:$true] %s70
      %73 = dma.hbm_to_vmem [thread:$0]  %s4, 16, %s71, [#allocation9]
    $region21: #{tpu_custom_call.1} parent=1 // pred_fallthru
      _
    // Predicated region
    $region22: #{tpu_custom_call.1} parent=1 // pred_check
      _
    $region23: #{tpu_custom_call.1} parent=1 // pred_check_branch
      %75 = sbr.rel (0) target = $region25
    $region24: #{tpu_custom_call.1} parent=1 // pred_region
      %s77 = ssub.s32 2048, 2048
      %78 = vsyncadd [#allocation12], %s77
      %s79 = sshll.u32 [#allocation11], 4
      %s80 = int_to_ptr.vmem [resolvable:$true] %s79
      %85 = dma.hbm_to_vmem [thread:$0]  %s5, 2048, %s80, [#allocation12], 128, 128, 8
    $region25: #{tpu_custom_call.1} parent=1 // pred_fallthru
      _
    // Predicated region
    $region26: #{tpu_custom_call.1} parent=1 // pred_check
      _
    $region27: #{tpu_custom_call.1} parent=1 // pred_check_branch
      %87 = sbr.rel (0) target = $region29
    $region28: #{tpu_custom_call.1} parent=1 // pred_region
      %s89 = ssub.s32 32, 32
      %90 = vsyncadd [#allocation12], %s89
      %s92 = sshll.u32 [#allocation13], 4
      %s93 = int_to_ptr.vmem [resolvable:$true] %s92
      %95 = dma.hbm_to_vmem [thread:$0]  %s6, 32, %s93, [#allocation12]
    $region29: #{tpu_custom_call.1} parent=1 // pred_fallthru
      _
    // Predicated region
    $region30: #{tpu_custom_call.1} parent=1 // pred_check
      _
    $region31: #{tpu_custom_call.1} parent=1 // pred_check_branch
      %97 = sbr.rel (0) target = $region33
    $region32: #{tpu_custom_call.1} parent=1 // pred_region
      %s99 = ssub.s32 2048, 2048
      %100 = vsyncadd [#allocation15], %s99
      %s101 = sshll.u32 [#allocation14], 4
      %s102 = int_to_ptr.vmem [resolvable:$true] %s101
      %107 = dma.hbm_to_vmem [thread:$0]  %s7, 2048, %s102, [#allocation15], 64, 64, 4
    $region33: #{tpu_custom_call.1} parent=1 // pred_fallthru
      _
    // Predicated region
    $region34: #{tpu_custom_call.1} parent=1 // pred_check
      _
    $region35: #{tpu_custom_call.1} parent=1 // pred_check_branch
      %109 = sbr.rel (0) target = $region37
    $region36: #{tpu_custom_call.1} parent=1 // pred_region
      %s111 = ssub.s32 16, 16
      %112 = vsyncadd [#allocation15], %s111
      %s114 = sshll.u32 [#allocation16], 4
      %s115 = int_to_ptr.vmem [resolvable:$true] %s114
      %117 = dma.hbm_to_vmem [thread:$0]  %s8, 16, %s115, [#allocation15]
    $region37: #{tpu_custom_call.1} parent=1 // pred_fallthru
      _
    // Predicated region
    $region38: #{tpu_custom_call.1} parent=1 // pred_check
      _
    $region39: #{tpu_custom_call.1} parent=1 // pred_check_branch
      %119 = sbr.rel (0) target = $region41
    $region40: #{tpu_custom_call.1} parent=1 // pred_region
      %120 = dma.done [#allocation3], 128
    $region41: #{tpu_custom_call.1} parent=1 // pred_fallthru
      _
    // Predicated region
    $region42: #{tpu_custom_call.1} parent=1 // pred_check
      _
    $region43: #{tpu_custom_call.1} parent=1 // pred_check_branch
      %122 = sbr.rel (0) target = $region45
    $region44: #{tpu_custom_call.1} parent=1 // pred_region
      %123 = dma.done [#allocation6], 2048
    $region45: #{tpu_custom_call.1} parent=1 // pred_fallthru
      _
    // Predicated region
    $region46: #{tpu_custom_call.1} parent=1 // pred_check
      _
    $region47: #{tpu_custom_call.1} parent=1 // pred_check_branch
      %125 = sbr.rel (0) target = $region49
    $region48: #{tpu_custom_call.1} parent=1 // pred_region
      %126 = dma.done [#allocation6], 32
    $region49: #{tpu_custom_call.1} parent=1 // pred_fallthru
      _
    // Predicated region
    $region50: #{tpu_custom_call.1} parent=1 // pred_check
      _
    $region51: #{tpu_custom_call.1} parent=1 // pred_check_branch
      %128 = sbr.rel (0) target = $region53
    $region52: #{tpu_custom_call.1} parent=1 // pred_region
      %129 = dma.done [#allocation9], 2048
    $region53: #{tpu_custom_call.1} parent=1 // pred_fallthru
      _
    // Predicated region
    $region54: #{tpu_custom_call.1} parent=1 // pred_check
      _
    $region55: #{tpu_custom_call.1} parent=1 // pred_check_branch
      %131 = sbr.rel (0) target = $region57
    $region56: #{tpu_custom_call.1} parent=1 // pred_region
      %132 = dma.done [#allocation9], 16
    $region57: #{tpu_custom_call.1} parent=1 // pred_fallthru
      _
    // Predicated region
    $region58: #{tpu_custom_call.1} parent=1 // pred_check
      _
    $region59: #{tpu_custom_call.1} parent=1 // pred_check_branch
      %134 = sbr.rel (0) target = $region61
    $region60: #{tpu_custom_call.1} parent=1 // pred_region
      %135 = dma.done [#allocation12], 2048
    $region61: #{tpu_custom_call.1} parent=1 // pred_fallthru
      _
    // Predicated region
    $region62: #{tpu_custom_call.1} parent=1 // pred_check
      _
    $region63: #{tpu_custom_call.1} parent=1 // pred_check_branch
      %137 = sbr.rel (0) target = $region65
    $region64: #{tpu_custom_call.1} parent=1 // pred_region
      %138 = dma.done [#allocation12], 32
    $region65: #{tpu_custom_call.1} parent=1 // pred_fallthru
      _
    // Predicated region
    $region66: #{tpu_custom_call.1} parent=1 // pred_check
      _
    $region67: #{tpu_custom_call.1} parent=1 // pred_check_branch
      %140 = sbr.rel (0) target = $region69
    $region68: #{tpu_custom_call.1} parent=1 // pred_region
      %141 = dma.done [#allocation15], 2048
    $region69: #{tpu_custom_call.1} parent=1 // pred_fallthru
      _
    // Predicated region
    $region70: #{tpu_custom_call.1} parent=1 // pred_check
      _
    $region71: #{tpu_custom_call.1} parent=1 // pred_check_branch
      %143 = sbr.rel (0) target = $region73
    $region72: #{tpu_custom_call.1} parent=1 // pred_region
      %144 = dma.done [#allocation15], 16
    $region73: #{tpu_custom_call.1} parent=1 // pred_fallthru
      _
    %v146 = vld [vmem:[#allocation2] sm:$0xff]
    %v147 = vpack.c.bf16 %v146, %v146
    %v148 = vld [vmem:[#allocation5] sm:$0xff]
    %v149 = vld [vmem:[#allocation5 + $0x8] sm:$0xff]
    %v150 = vld [vmem:[#allocation5 + $0x10] sm:$0xff]
    %v151 = vld [vmem:[#allocation5 + $0x18] sm:$0xff]
    %v152 = vld [vmem:[#allocation5 + $0x20] sm:$0xff]
    %v153 = vld [vmem:[#allocation5 + $0x28] sm:$0xff]
    %v154 = vld [vmem:[#allocation5 + $0x30] sm:$0xff]
    %v155 = vld [vmem:[#allocation5 + $0x38] sm:$0xff]
    %v156 = vld [vmem:[#allocation5 + $0x40] sm:$0xff]
    %v157 = vld [vmem:[#allocation5 + $0x48] sm:$0xff]
    %v158 = vld [vmem:[#allocation5 + $0x50] sm:$0xff]
    %v159 = vld [vmem:[#allocation5 + $0x58] sm:$0xff]
    %v160 = vld [vmem:[#allocation5 + $0x60] sm:$0xff]
    %v161 = vld [vmem:[#allocation5 + $0x68] sm:$0xff]
    %v162 = vld [vmem:[#allocation5 + $0x70] sm:$0xff]
    %v163 = vld [vmem:[#allocation5 + $0x78] sm:$0xff]
    %v164 = vld [vmem:[#allocation7] sm:$0x3]
    %v166 = vlaneseq
    %v167 = vshrl.u32 %v166, 7
    %v168 = vsub.s32 0, %v167
    %v169 = vrot.slane %v164, %v168
    %v170 = vlaneseq
    %v171 = vshrl.u32 %v170, 7
    %v172 = vsub.s32 1, %v171
    %v173 = vrot.slane %v164, %v172
    %v192 = vunpack.c.l.b16 %v148
    %v193 = vunpack.c.h.b16 %v148
    %v194 = vunpack.c.l.b16 %v149
    %v195 = vunpack.c.h.b16 %v149
    %v196 = vunpack.c.l.b16 %v150
    %v197 = vunpack.c.h.b16 %v150
    %v198 = vunpack.c.l.b16 %v151
    %v199 = vunpack.c.h.b16 %v151
    %v200 = vunpack.c.l.b16 %v152
    %v201 = vunpack.c.h.b16 %v152
    %v202 = vunpack.c.l.b16 %v153
    %v203 = vunpack.c.h.b16 %v153
    %v204 = vunpack.c.l.b16 %v154
    %v205 = vunpack.c.h.b16 %v154
    %v206 = vunpack.c.l.b16 %v155
    %v207 = vunpack.c.h.b16 %v155
    %v208 = vunpack.c.l.b16 %v156
    %v209 = vunpack.c.h.b16 %v156
    %v210 = vunpack.c.l.b16 %v157
    %v211 = vunpack.c.h.b16 %v157
    %v212 = vunpack.c.l.b16 %v158
    %v213 = vunpack.c.h.b16 %v158
    %v214 = vunpack.c.l.b16 %v159
    %v215 = vunpack.c.h.b16 %v159
    %v216 = vunpack.c.l.b16 %v160
    %v217 = vunpack.c.h.b16 %v160
    %v218 = vunpack.c.l.b16 %v161
    %v219 = vunpack.c.h.b16 %v161
    %v220 = vunpack.c.l.b16 %v162
    %v221 = vunpack.c.h.b16 %v162
    %v222 = vunpack.c.l.b16 %v163
    %v223 = vunpack.c.h.b16 %v163
    %v224 = vpack.c.b16 %v194, %v192
    %v225 = vpack.c.b16 %v195, %v193
    %v226 = vpack.c.b16 %v198, %v196
    %v227 = vpack.c.b16 %v199, %v197
    %v228 = vpack.c.b16 %v202, %v200
    %v229 = vpack.c.b16 %v203, %v201
    %v230 = vpack.c.b16 %v206, %v204
    %v231 = vpack.c.b16 %v207, %v205
    %v232 = vpack.c.b16 %v210, %v208
    %v233 = vpack.c.b16 %v211, %v209
    %v234 = vpack.c.b16 %v214, %v212
    %v235 = vpack.c.b16 %v215, %v213
    %v236 = vpack.c.b16 %v218, %v216
    %v237 = vpack.c.b16 %v219, %v217
    %v238 = vpack.c.b16 %v222, %v220
    %v239 = vpack.c.b16 %v223, %v221
    %256 = vmatprep.subr.bf16.mxu0 %v225
    %257 = vmatpush1.bf16.msra.mxu0 %v224
    %258 = vmatprep.subr.bf16.mxu0 %v227
    %259 = vmatpush1.bf16.msra.mxu0 %v226
    %260 = vmatprep.subr.bf16.mxu0 %v229
    %261 = vmatpush1.bf16.msra.mxu0 %v228
    %262 = vmatprep.subr.bf16.mxu0 %v231
    %263 = vmatpush1.bf16.msra.mxu0 %v230
    %264 = vmatprep.subr.bf16.mxu0 %v233
    %265 = vmatpush1.bf16.msra.mxu0 %v232
    %266 = vmatprep.subr.bf16.mxu0 %v235
    %267 = vmatpush1.bf16.msra.mxu0 %v234
    %268 = vmatprep.subr.bf16.mxu0 %v237
    %269 = vmatpush1.bf16.msra.mxu0 %v236
    %270 = vmatprep.subr.bf16.mxu0 %v239
    %271 = vmatpush1.bf16.msra.mxu0 %v238
    %272 = vmatprep.subr.bf16.mxu0 0
    %273 = vmatpush1.bf16.msra.mxu0 0
    %274 = vmatprep.subr.bf16.mxu0 0
    %275 = vmatpush1.bf16.msra.mxu0 0
    %276 = vmatprep.subr.bf16.mxu0 0
    %277 = vmatpush1.bf16.msra.mxu0 0
    %278 = vmatprep.subr.bf16.mxu0 0
    %279 = vmatpush1.bf16.msra.mxu0 0
    %280 = vmatprep.subr.bf16.mxu0 0
    %281 = vmatpush1.bf16.msra.mxu0 0
    %282 = vmatprep.subr.bf16.mxu0 0
    %283 = vmatpush1.bf16.msra.mxu0 0
    %284 = vmatprep.subr.bf16.mxu0 0
    %285 = vmatpush1.bf16.msra.mxu0 0
    %286 = vmatprep.subr.bf16.mxu0 0
    %287 = vmatpush1.bf16.msra.mxu0 0
    %288 = vmatprep.mubr.bf16.mxu0 0
    %289 = vmatmul.mubr.bf16.gmra.mrb[0].mxu0 %v147
    %v290 = vpop.f32.mrb[0].mxu0
    %v291 = vadd.f32 %v169, %v290
    %v292 = vpop.f32.mrb[0].mxu0
    %v293 = vadd.f32 %v173, %v292
    %v294 = vpop.f32.mrb[0].mxu0
    %v295 = vpop.f32.mrb[0].mxu0
    %296 = vdwg.mxu0
    %v297 = vmax.f32 %v291, 0.0
    %v298 = vmax.f32 %v293, 0.0
    %v299 = vpack.c.bf16 %v297, %v297
    %v300 = vpack.c.bf16 %v298, %v298
    %v301 = vld [vmem:[#allocation8] sm:$0xf]
    %v302 = vld [vmem:[#allocation8 + $0x4] sm:$0xf]
    %v303 = vld [vmem:[#allocation8 + $0x8] sm:$0xf]
    %v304 = vld [vmem:[#allocation8 + $0xc] sm:$0xf]
    %v305 = vld [vmem:[#allocation8 + $0x10] sm:$0xf]
    %v306 = vld [vmem:[#allocation8 + $0x14] sm:$0xf]
    %v307 = vld [vmem:[#allocation8 + $0x18] sm:$0xf]
    %v308 = vld [vmem:[#allocation8 + $0x1c] sm:$0xf]
    %v309 = vld [vmem:[#allocation8 + $0x20] sm:$0xf]
    %v310 = vld [vmem:[#allocation8 + $0x24] sm:$0xf]
    %v311 = vld [vmem:[#allocation8 + $0x28] sm:$0xf]
    %v312 = vld [vmem:[#allocation8 + $0x2c] sm:$0xf]
    %v313 = vld [vmem:[#allocation8 + $0x30] sm:$0xf]
    %v314 = vld [vmem:[#allocation8 + $0x34] sm:$0xf]
    %v315 = vld [vmem:[#allocation8 + $0x38] sm:$0xf]
    %v316 = vld [vmem:[#allocation8 + $0x3c] sm:$0xf]
    %v317 = vld [vmem:[#allocation8 + $0x40] sm:$0xf]
    %v318 = vld [vmem:[#allocation8 + $0x44] sm:$0xf]
    %v319 = vld [vmem:[#allocation8 + $0x48] sm:$0xf]
    %v320 = vld [vmem:[#allocation8 + $0x4c] sm:$0xf]
    %v321 = vld [vmem:[#allocation8 + $0x50] sm:$0xf]
    %v322 = vld [vmem:[#allocation8 + $0x54] sm:$0xf]
    %v323 = vld [vmem:[#allocation8 + $0x58] sm:$0xf]
    %v324 = vld [vmem:[#allocation8 + $0x5c] sm:$0xf]
    %v325 = vld [vmem:[#allocation8 + $0x60] sm:$0xf]
    %v326 = vld [vmem:[#allocation8 + $0x64] sm:$0xf]
    %v327 = vld [vmem:[#allocation8 + $0x68] sm:$0xf]
    %v328 = vld [vmem:[#allocation8 + $0x6c] sm:$0xf]
    %v329 = vld [vmem:[#allocation8 + $0x70] sm:$0xf]
    %v330 = vld [vmem:[#allocation8 + $0x74] sm:$0xf]
    %v331 = vld [vmem:[#allocation8 + $0x78] sm:$0xf]
    %v332 = vld [vmem:[#allocation8 + $0x7c] sm:$0xf]
    %v333 = vld [vmem:[#allocation10] sm:$0x1]
    %v335 = vlaneseq
    %v336 = vshrl.u32 %v335, 7
    %v337 = vsub.s32 0, %v336
    %v338 = vrot.slane %v333, %v337
    %v372 = vunpack.c.l.b16 %v301
    %v373 = vunpack.c.l.b16 %v302
    %v374 = vunpack.c.l.b16 %v303
    %v375 = vunpack.c.l.b16 %v304
    %v376 = vunpack.c.l.b16 %v305
    %v377 = vunpack.c.l.b16 %v306
    %v378 = vunpack.c.l.b16 %v307
    %v379 = vunpack.c.l.b16 %v308
    %v380 = vunpack.c.l.b16 %v309
    %v381 = vunpack.c.l.b16 %v310
    %v382 = vunpack.c.l.b16 %v311
    %v383 = vunpack.c.l.b16 %v312
    %v384 = vunpack.c.l.b16 %v313
    %v385 = vunpack.c.l.b16 %v314
    %v386 = vunpack.c.l.b16 %v315
    %v387 = vunpack.c.l.b16 %v316
    %v388 = vunpack.c.l.b16 %v317
    %v389 = vunpack.c.l.b16 %v318
    %v390 = vunpack.c.l.b16 %v319
    %v391 = vunpack.c.l.b16 %v320
    %v392 = vunpack.c.l.b16 %v321
    %v393 = vunpack.c.l.b16 %v322
    %v394 = vunpack.c.l.b16 %v323
    %v395 = vunpack.c.l.b16 %v324
    %v396 = vunpack.c.l.b16 %v325
    %v397 = vunpack.c.l.b16 %v326
    %v398 = vunpack.c.l.b16 %v327
    %v399 = vunpack.c.l.b16 %v328
    %v400 = vunpack.c.l.b16 %v329
    %v401 = vunpack.c.l.b16 %v330
    %v402 = vunpack.c.l.b16 %v331
    %v403 = vunpack.c.l.b16 %v332
    %v404 = vpack.c.b16 %v373, %v372
    %v405 = vpack.c.b16 %v375, %v374
    %v406 = vpack.c.b16 %v377, %v376
    %v407 = vpack.c.b16 %v379, %v378
    %v408 = vpack.c.b16 %v381, %v380
    %v409 = vpack.c.b16 %v383, %v382
    %v410 = vpack.c.b16 %v385, %v384
    %v411 = vpack.c.b16 %v387, %v386
    %v412 = vpack.c.b16 %v389, %v388
    %v413 = vpack.c.b16 %v391, %v390
    %v414 = vpack.c.b16 %v393, %v392
    %v415 = vpack.c.b16 %v395, %v394
    %v416 = vpack.c.b16 %v397, %v396
    %v417 = vpack.c.b16 %v399, %v398
    %v418 = vpack.c.b16 %v401, %v400
    %v419 = vpack.c.b16 %v403, %v402
    %436 = vmatprep.subr.bf16.mxu0 0
    %437 = vmatpush1.bf16.msra.mxu0 %v404
    %438 = vmatprep.subr.bf16.mxu0 0
    %439 = vmatpush1.bf16.msra.mxu0 %v405
    %440 = vmatprep.subr.bf16.mxu0 0
    %441 = vmatpush1.bf16.msra.mxu0 %v406
    %442 = vmatprep.subr.bf16.mxu0 0
    %443 = vmatpush1.bf16.msra.mxu0 %v407
    %444 = vmatprep.subr.bf16.mxu0 0
    %445 = vmatpush1.bf16.msra.mxu0 %v408
    %446 = vmatprep.subr.bf16.mxu0 0
    %447 = vmatpush1.bf16.msra.mxu0 %v409
    %448 = vmatprep.subr.bf16.mxu0 0
    %449 = vmatpush1.bf16.msra.mxu0 %v410
    %450 = vmatprep.subr.bf16.mxu0 0
    %451 = vmatpush1.bf16.msra.mxu0 %v411
    %452 = vmatprep.subr.bf16.mxu0 0
    %453 = vmatpush1.bf16.msra.mxu0 %v412
    %454 = vmatprep.subr.bf16.mxu0 0
    %455 = vmatpush1.bf16.msra.mxu0 %v413
    %456 = vmatprep.subr.bf16.mxu0 0
    %457 = vmatpush1.bf16.msra.mxu0 %v414
    %458 = vmatprep.subr.bf16.mxu0 0
    %459 = vmatpush1.bf16.msra.mxu0 %v415
    %460 = vmatprep.subr.bf16.mxu0 0
    %461 = vmatpush1.bf16.msra.mxu0 %v416
    %462 = vmatprep.subr.bf16.mxu0 0
    %463 = vmatpush1.bf16.msra.mxu0 %v417
    %464 = vmatprep.subr.bf16.mxu0 0
    %465 = vmatpush1.bf16.msra.mxu0 %v418
    %466 = vmatprep.subr.bf16.mxu0 0
    %467 = vmatpush1.bf16.msra.mxu0 %v419
    %468 = vmatprep.mubr.bf16.mxu0 %v300
    %469 = vmatmul.mubr.bf16.gmra.mrb[0].mxu0 %v299
    %v470 = vpop.f32.mrb[0].mxu0
    %v471 = vadd.f32 %v338, %v470
    %v472 = vpop.f32.mrb[0].mxu0
    %v473 = vpop.f32.mrb[0].mxu0
    %v474 = vpop.f32.mrb[0].mxu0
    %475 = vdwg.mxu0
    %v476 = vmax.f32 %v471, 0.0
    %v477 = vpack.c.bf16 %v476, %v476
    %v478 = vld [vmem:[#allocation11] sm:$0xff]
    %v479 = vld [vmem:[#allocation11 + $0x8] sm:$0xff]
    %v480 = vld [vmem:[#allocation11 + $0x10] sm:$0xff]
    %v481 = vld [vmem:[#allocation11 + $0x18] sm:$0xff]
    %v482 = vld [vmem:[#allocation11 + $0x20] sm:$0xff]
    %v483 = vld [vmem:[#allocation11 + $0x28] sm:$0xff]
    %v484 = vld [vmem:[#allocation11 + $0x30] sm:$0xff]
    %v485 = vld [vmem:[#allocation11 + $0x38] sm:$0xff]
    %v486 = vld [vmem:[#allocation11 + $0x40] sm:$0xff]
    %v487 = vld [vmem:[#allocation11 + $0x48] sm:$0xff]
    %v488 = vld [vmem:[#allocation11 + $0x50] sm:$0xff]
    %v489 = vld [vmem:[#allocation11 + $0x58] sm:$0xff]
    %v490 = vld [vmem:[#allocation11 + $0x60] sm:$0xff]
    %v491 = vld [vmem:[#allocation11 + $0x68] sm:$0xff]
    %v492 = vld [vmem:[#allocation11 + $0x70] sm:$0xff]
    %v493 = vld [vmem:[#allocation11 + $0x78] sm:$0xff]
    %v494 = vld [vmem:[#allocation13] sm:$0x3]
    %v496 = vlaneseq
    %v497 = vshrl.u32 %v496, 7
    %v498 = vsub.s32 0, %v497
    %v499 = vrot.slane %v494, %v498
    %v500 = vlaneseq
    %v501 = vshrl.u32 %v500, 7
    %v502 = vsub.s32 1, %v501
    %v503 = vrot.slane %v494, %v502
    %v522 = vunpack.c.l.b16 %v478
    %v523 = vunpack.c.h.b16 %v478
    %v524 = vunpack.c.l.b16 %v479
    %v525 = vunpack.c.h.b16 %v479
    %v526 = vunpack.c.l.b16 %v480
    %v527 = vunpack.c.h.b16 %v480
    %v528 = vunpack.c.l.b16 %v481
    %v529 = vunpack.c.h.b16 %v481
    %v530 = vunpack.c.l.b16 %v482
    %v531 = vunpack.c.h.b16 %v482
    %v532 = vunpack.c.l.b16 %v483
    %v533 = vunpack.c.h.b16 %v483
    %v534 = vunpack.c.l.b16 %v484
    %v535 = vunpack.c.h.b16 %v484
    %v536 = vunpack.c.l.b16 %v485
    %v537 = vunpack.c.h.b16 %v485
    %v538 = vunpack.c.l.b16 %v486
    %v539 = vunpack.c.h.b16 %v486
    %v540 = vunpack.c.l.b16 %v487
    %v541 = vunpack.c.h.b16 %v487
    %v542 = vunpack.c.l.b16 %v488
    %v543 = vunpack.c.h.b16 %v488
    %v544 = vunpack.c.l.b16 %v489
    %v545 = vunpack.c.h.b16 %v489
    %v546 = vunpack.c.l.b16 %v490
    %v547 = vunpack.c.h.b16 %v490
    %v548 = vunpack.c.l.b16 %v491
    %v549 = vunpack.c.h.b16 %v491
    %v550 = vunpack.c.l.b16 %v492
    %v551 = vunpack.c.h.b16 %v492
    %v552 = vunpack.c.l.b16 %v493
    %v553 = vunpack.c.h.b16 %v493
    %v554 = vpack.c.b16 %v524, %v522
    %v555 = vpack.c.b16 %v525, %v523
    %v556 = vpack.c.b16 %v528, %v526
    %v557 = vpack.c.b16 %v529, %v527
    %v558 = vpack.c.b16 %v532, %v530
    %v559 = vpack.c.b16 %v533, %v531
    %v560 = vpack.c.b16 %v536, %v534
    %v561 = vpack.c.b16 %v537, %v535
    %v562 = vpack.c.b16 %v540, %v538
    %v563 = vpack.c.b16 %v541, %v539
    %v564 = vpack.c.b16 %v544, %v542
    %v565 = vpack.c.b16 %v545, %v543
    %v566 = vpack.c.b16 %v548, %v546
    %v567 = vpack.c.b16 %v549, %v547
    %v568 = vpack.c.b16 %v552, %v550
    %v569 = vpack.c.b16 %v553, %v551
    %586 = vmatprep.subr.bf16.mxu0 %v555
    %587 = vmatpush1.bf16.msra.mxu0 %v554
    %588 = vmatprep.subr.bf16.mxu0 %v557
    %589 = vmatpush1.bf16.msra.mxu0 %v556
    %590 = vmatprep.subr.bf16.mxu0 %v559
    %591 = vmatpush1.bf16.msra.mxu0 %v558
    %592 = vmatprep.subr.bf16.mxu0 %v561
    %593 = vmatpush1.bf16.msra.mxu0 %v560
    %594 = vmatprep.subr.bf16.mxu0 %v563
    %595 = vmatpush1.bf16.msra.mxu0 %v562
    %596 = vmatprep.subr.bf16.mxu0 %v565
    %597 = vmatpush1.bf16.msra.mxu0 %v564
    %598 = vmatprep.subr.bf16.mxu0 %v567
    %599 = vmatpush1.bf16.msra.mxu0 %v566
    %600 = vmatprep.subr.bf16.mxu0 %v569
    %601 = vmatpush1.bf16.msra.mxu0 %v568
    %602 = vmatprep.subr.bf16.mxu0 0
    %603 = vmatpush1.bf16.msra.mxu0 0
    %604 = vmatprep.subr.bf16.mxu0 0
    %605 = vmatpush1.bf16.msra.mxu0 0
    %606 = vmatprep.subr.bf16.mxu0 0
    %607 = vmatpush1.bf16.msra.mxu0 0
    %608 = vmatprep.subr.bf16.mxu0 0
    %609 = vmatpush1.bf16.msra.mxu0 0
    %610 = vmatprep.subr.bf16.mxu0 0
    %611 = vmatpush1.bf16.msra.mxu0 0
    %612 = vmatprep.subr.bf16.mxu0 0
    %613 = vmatpush1.bf16.msra.mxu0 0
    %614 = vmatprep.subr.bf16.mxu0 0
    %615 = vmatpush1.bf16.msra.mxu0 0
    %616 = vmatprep.subr.bf16.mxu0 0
    %617 = vmatpush1.bf16.msra.mxu0 0
    %618 = vmatprep.mubr.bf16.mxu0 0
    %619 = vmatmul.mubr.bf16.gmra.mrb[0].mxu0 %v477
    %v620 = vpop.f32.mrb[0].mxu0
    %v621 = vadd.f32 %v499, %v620
    %v622 = vpop.f32.mrb[0].mxu0
    %v623 = vadd.f32 %v503, %v622
    %v624 = vpop.f32.mrb[0].mxu0
    %v625 = vpop.f32.mrb[0].mxu0
    %626 = vdwg.mxu0
    %v627 = vmax.f32 %v621, 0.0
    %v628 = vmax.f32 %v623, 0.0
    %v629 = vpack.c.bf16 %v627, %v627
    %v630 = vpack.c.bf16 %v628, %v628
    %v631 = vld [vmem:[#allocation14] sm:$0xf]
    %v632 = vld [vmem:[#allocation14 + $0x4] sm:$0xf]
    %v633 = vld [vmem:[#allocation14 + $0x8] sm:$0xf]
    %v634 = vld [vmem:[#allocation14 + $0xc] sm:$0xf]
    %v635 = vld [vmem:[#allocation14 + $0x10] sm:$0xf]
    %v636 = vld [vmem:[#allocation14 + $0x14] sm:$0xf]
    %v637 = vld [vmem:[#allocation14 + $0x18] sm:$0xf]
    %v638 = vld [vmem:[#allocation14 + $0x1c] sm:$0xf]
    %v639 = vld [vmem:[#allocation14 + $0x20] sm:$0xf]
    %v640 = vld [vmem:[#allocation14 + $0x24] sm:$0xf]
    %v641 = vld [vmem:[#allocation14 + $0x28] sm:$0xf]
    %v642 = vld [vmem:[#allocation14 + $0x2c] sm:$0xf]
    %v643 = vld [vmem:[#allocation14 + $0x30] sm:$0xf]
    %v644 = vld [vmem:[#allocation14 + $0x34] sm:$0xf]
    %v645 = vld [vmem:[#allocation14 + $0x38] sm:$0xf]
    %v646 = vld [vmem:[#allocation14 + $0x3c] sm:$0xf]
    %v647 = vld [vmem:[#allocation14 + $0x40] sm:$0xf]
    %v648 = vld [vmem:[#allocation14 + $0x44] sm:$0xf]
    %v649 = vld [vmem:[#allocation14 + $0x48] sm:$0xf]
    %v650 = vld [vmem:[#allocation14 + $0x4c] sm:$0xf]
    %v651 = vld [vmem:[#allocation14 + $0x50] sm:$0xf]
    %v652 = vld [vmem:[#allocation14 + $0x54] sm:$0xf]
    %v653 = vld [vmem:[#allocation14 + $0x58] sm:$0xf]
    %v654 = vld [vmem:[#allocation14 + $0x5c] sm:$0xf]
    %v655 = vld [vmem:[#allocation14 + $0x60] sm:$0xf]
    %v656 = vld [vmem:[#allocation14 + $0x64] sm:$0xf]
    %v657 = vld [vmem:[#allocation14 + $0x68] sm:$0xf]
    %v658 = vld [vmem:[#allocation14 + $0x6c] sm:$0xf]
    %v659 = vld [vmem:[#allocation14 + $0x70] sm:$0xf]
    %v660 = vld [vmem:[#allocation14 + $0x74] sm:$0xf]
    %v661 = vld [vmem:[#allocation14 + $0x78] sm:$0xf]
    %v662 = vld [vmem:[#allocation14 + $0x7c] sm:$0xf]
    %v663 = vld [vmem:[#allocation16] sm:$0x1]
    %v665 = vlaneseq
    %v666 = vshrl.u32 %v665, 7
    %v667 = vsub.s32 0, %v666
    %v668 = vrot.slane %v663, %v667
    %v702 = vunpack.c.l.b16 %v631
    %v703 = vunpack.c.l.b16 %v632
    %v704 = vunpack.c.l.b16 %v633
    %v705 = vunpack.c.l.b16 %v634
    %v706 = vunpack.c.l.b16 %v635
    %v707 = vunpack.c.l.b16 %v636
    %v708 = vunpack.c.l.b16 %v637
    %v709 = vunpack.c.l.b16 %v638
    %v710 = vunpack.c.l.b16 %v639
    %v711 = vunpack.c.l.b16 %v640
    %v712 = vunpack.c.l.b16 %v641
    %v713 = vunpack.c.l.b16 %v642
    %v714 = vunpack.c.l.b16 %v643
    %v715 = vunpack.c.l.b16 %v644
    %v716 = vunpack.c.l.b16 %v645
    %v717 = vunpack.c.l.b16 %v646
    %v718 = vunpack.c.l.b16 %v647
    %v719 = vunpack.c.l.b16 %v648
    %v720 = vunpack.c.l.b16 %v649
    %v721 = vunpack.c.l.b16 %v650
    %v722 = vunpack.c.l.b16 %v651
    %v723 = vunpack.c.l.b16 %v652
    %v724 = vunpack.c.l.b16 %v653
    %v725 = vunpack.c.l.b16 %v654
    %v726 = vunpack.c.l.b16 %v655
    %v727 = vunpack.c.l.b16 %v656
    %v728 = vunpack.c.l.b16 %v657
    %v729 = vunpack.c.l.b16 %v658
    %v730 = vunpack.c.l.b16 %v659
    %v731 = vunpack.c.l.b16 %v660
    %v732 = vunpack.c.l.b16 %v661
    %v733 = vunpack.c.l.b16 %v662
    %v734 = vpack.c.b16 %v703, %v702
    %v735 = vpack.c.b16 %v705, %v704
    %v736 = vpack.c.b16 %v707, %v706
    %v737 = vpack.c.b16 %v709, %v708
    %v738 = vpack.c.b16 %v711, %v710
    %v739 = vpack.c.b16 %v713, %v712
    %v740 = vpack.c.b16 %v715, %v714
    %v741 = vpack.c.b16 %v717, %v716
    %v742 = vpack.c.b16 %v719, %v718
    %v743 = vpack.c.b16 %v721, %v720
    %v744 = vpack.c.b16 %v723, %v722
    %v745 = vpack.c.b16 %v725, %v724
    %v746 = vpack.c.b16 %v727, %v726
    %v747 = vpack.c.b16 %v729, %v728
    %v748 = vpack.c.b16 %v731, %v730
    %v749 = vpack.c.b16 %v733, %v732
    %766 = vmatprep.subr.bf16.mxu0 0
    %767 = vmatpush1.bf16.msra.mxu0 %v734
    %768 = vmatprep.subr.bf16.mxu0 0
    %769 = vmatpush1.bf16.msra.mxu0 %v735
    %770 = vmatprep.subr.bf16.mxu0 0
    %771 = vmatpush1.bf16.msra.mxu0 %v736
    %772 = vmatprep.subr.bf16.mxu0 0
    %773 = vmatpush1.bf16.msra.mxu0 %v737
    %774 = vmatprep.subr.bf16.mxu0 0
    %775 = vmatpush1.bf16.msra.mxu0 %v738
    %776 = vmatprep.subr.bf16.mxu0 0
    %777 = vmatpush1.bf16.msra.mxu0 %v739
    %778 = vmatprep.subr.bf16.mxu0 0
    %779 = vmatpush1.bf16.msra.mxu0 %v740
    %780 = vmatprep.subr.bf16.mxu0 0
    %781 = vmatpush1.bf16.msra.mxu0 %v741
    %782 = vmatprep.subr.bf16.mxu0 0
    %783 = vmatpush1.bf16.msra.mxu0 %v742
    %784 = vmatprep.subr.bf16.mxu0 0
    %785 = vmatpush1.bf16.msra.mxu0 %v743
    %786 = vmatprep.subr.bf16.mxu0 0
    %787 = vmatpush1.bf16.msra.mxu0 %v744
    %788 = vmatprep.subr.bf16.mxu0 0
    %789 = vmatpush1.bf16.msra.mxu0 %v745
    %790 = vmatprep.subr.bf16.mxu0 0
    %791 = vmatpush1.bf16.msra.mxu0 %v746
    %792 = vmatprep.subr.bf16.mxu0 0
    %793 = vmatpush1.bf16.msra.mxu0 %v747
    %794 = vmatprep.subr.bf16.mxu0 0
    %795 = vmatpush1.bf16.msra.mxu0 %v748
    %796 = vmatprep.subr.bf16.mxu0 0
    %797 = vmatpush1.bf16.msra.mxu0 %v749
    %798 = vmatprep.mubr.bf16.mxu0 %v630
    %799 = vmatmul.mubr.bf16.gmra.mrb[0].mxu0 %v629
    %v800 = vpop.f32.mrb[0].mxu0
    %v801 = vadd.f32 %v668, %v800
    %v802 = vpop.f32.mrb[0].mxu0
    %v803 = vpop.f32.mrb[0].mxu0
    %v804 = vpop.f32.mrb[0].mxu0
    %805 = vdwg.mxu0
    %v806 = vsub.f32 0.0, %v801
    %v807 = vmul.f32 %v806, 1.442695
    %v808 = vpow.pop %v807
    %v809 = vadd.f32 %v808, 1.0
    %v810 = vrcp.pop %v809
    %811 = vst [vmem:[#allocation17] sm:$0xff] %v810
    // Predicated region
    $region74: #{tpu_custom_call.1} parent=1 // pred_check
      _
    $region75: #{tpu_custom_call.1} parent=1 // pred_check_branch
      %813 = sbr.rel (0) target = $region77
    $region76: #{tpu_custom_call.1} parent=1 // pred_region
      %s815 = ssub.s32 128, 128
      %816 = vsyncadd [#allocation4], %s815
      %s818 = sshll.u32 [#allocation17], 4
      %s819 = int_to_ptr.vmem [resolvable:$true] %s818
      %821 = dma.vmem_to_hbm [thread:$0]  %s819, 128, %s9, [#allocation4]
    $region77: #{tpu_custom_call.1} parent=1 // pred_fallthru
      _
    // Predicated region
    $region78: #{tpu_custom_call.1} parent=1 // pred_check
      _
    $region79: #{tpu_custom_call.1} parent=1 // pred_check_branch
      %823 = sbr.rel (0) target = $region81
    $region80: #{tpu_custom_call.1} parent=1 // pred_region
      %824 = dma.done [#allocation4], 128
    $region81: #{tpu_custom_call.1} parent=1 // pred_fallthru
      _
    %825 = vsyncpa [#allocation3], 1
    %826 = vsyncpa [#allocation6], 1
    %827 = vsyncpa [#allocation9], 1
    %828 = vsyncpa [#allocation12], 1
    %829 = vsyncpa [#allocation15], 1
    %830 = vsyncpa [#allocation4], 1

</llo_original>
